<compile_context>
chip_gen: v5e
topology: v5e:2x2
jax: 0.10.0
libtpu: 0.0.40
codegen_flags: <defaults>
</compile_context>

<pallas_src>
import functools

import jax
import jax.numpy as jnp
from jax import lax
from jax.experimental import pallas as pl
from jax.experimental.pallas import tpu as pltpu

_EPS = 1e-5


# ---------------------------------------------------------------------------
# derivative along the time (H) axis:  x[:, 1:, :] - x[:, :-1, :]
# ---------------------------------------------------------------------------
def _deriv_kernel(x_ref, o_ref):
    x = x_ref[0]                                    # (H, W)
    o_ref[0] = (x[1:, :] - x[:-1, :]).astype(o_ref.dtype)


def derivative_pallas(x_nhw):
    N, H, W = x_nhw.shape
    return pl.pallas_call(
        _deriv_kernel,
        grid=(N,),
        in_specs=[pl.BlockSpec((1, H, W), lambda n: (n, 0, 0))],
        out_specs=pl.BlockSpec((1, H - 1, W), lambda n: (n, 0, 0)),
        out_shape=jax.ShapeDtypeStruct((N, H - 1, W), jnp.bfloat16),
        compiler_params=pltpu.CompilerParams(
            dimension_semantics=("parallel",)),
    )(x_nhw)


# ---------------------------------------------------------------------------
# Conv2d (NHWC) as a Pallas kernel: big-M per-tap matmuls, bf16 in / f32 acc
# ---------------------------------------------------------------------------
def _conv_kernel(xd_ref, w_ref, b_ref, o_ref, acc_ref, *,
                 sh, sw, KH, KW, TH, W_out, W_out_p):
    # xd_ref : (1, sh*sw, Hq, Wq, Cin)  stride-phase-decomposed padded input (bf16)
    # w_ref  : (KH, KW, Cin, Cout)      bf16
    # b_ref  : (1, Cout)                f32
    # o_ref  : (1, TH, W_out, Cout)     f32
    # acc_ref: (TH*W_out_p, Cout)       f32 VMEM scratch accumulator
    i = pl.program_id(1)                            # output-row block index
    cin = xd_ref.shape[-1]
    cout = w_ref.shape[-1]
    acc_ref[...] = jnp.zeros_like(acc_ref)
    for kh in range(KH):
        rh, qh = kh % sh, kh // sh
        for kw in range(KW):
            rw, qw = kw % sw, kw // sw
            # contiguous (TH, W_out_p, Cin) rectangle thanks to the phase
            # decomposition; collapse is vreg-aligned (W_out_p % 16 == 0).
            slab = xd_ref[0, rh * sw + rw,
                          pl.ds(i * TH + qh, TH),
                          pl.ds(qw, W_out_p), :]
            slab = slab.reshape(TH * W_out_p, cin)
            acc_ref[...] += jnp.dot(slab, w_ref[kh, kw],
                                    preferred_element_type=jnp.float32)
    out = acc_ref[...] + b_ref[...]
    out = out.reshape(TH, W_out_p, cout)[:, :W_out, :]
    o_ref[0, :, :, :] = out.astype(o_ref.dtype)


def _pick_row_block(h_out, w_out_p, max_m=512):
    """Largest divisor TH of h_out with TH * w_out_p <= max_m (>=1)."""
    th = 1
    for cand in range(1, h_out + 1):
        if h_out % cand == 0 and cand * w_out_p <= max_m:
            th = cand
    return th


def conv2d_nhwc(x, w, b, stride, padding):
    """x: (N,H,W,Cin), w: (KH,KW,Cin,Cout), b: (Cout,) -> (N,H_out,W_out,Cout) f32."""
    sh, sw = stride
    ph, pw = padding
    N, H, W, Cin = x.shape
    KH, KW, _, Cout = w.shape
    H_out = (H + 2 * ph - KH) // sh + 1
    W_out = (W + 2 * pw - KW) // sw + 1
    # Pad the per-row M sub-axis to a multiple of 16 so in-kernel reshapes are
    # vreg-aligned; the extra (junk) output columns are computed and dropped.
    W_out_p = -(-W_out // 16) * 16
    TH = _pick_row_block(H_out, W_out_p)
    nH = H_out // TH
    qh_max = (KH - 1) // sh
    qw_max = (KW - 1) // sw
    Hq = max(H_out + qh_max, -(-(H + 2 * ph) // sh))
    Wq = max(W_out_p + qw_max, -(-(W + 2 * pw) // sw))

    x = x.astype(jnp.bfloat16)
    w = w.astype(jnp.bfloat16)
    xp = jnp.pad(x, ((0, 0),
                     (ph, sh * Hq - H - ph),
                     (pw, sw * Wq - W - pw),
                     (0, 0)))
    # stride-phase decomposition: padded (h, w) = (sh*hq + rh, sw*wq + rw)
    xd = xp.reshape(N, Hq, sh, Wq, sw, Cin)
    xd = xd.transpose(0, 2, 4, 1, 3, 5).reshape(N, sh * sw, Hq, Wq, Cin)

    kernel = functools.partial(_conv_kernel, sh=sh, sw=sw, KH=KH, KW=KW,
                               TH=TH, W_out=W_out, W_out_p=W_out_p)
    return pl.pallas_call(
        kernel,
        grid=(N, nH),
        in_specs=[
            pl.BlockSpec((1, sh * sw, Hq, Wq, Cin),
                         lambda n, i: (n, 0, 0, 0, 0)),
            pl.BlockSpec((KH, KW, Cin, Cout), lambda n, i: (0, 0, 0, 0)),
            pl.BlockSpec((1, Cout), lambda n, i: (0, 0)),
        ],
        out_specs=pl.BlockSpec((1, TH, W_out, Cout), lambda n, i: (n, i, 0, 0)),
        out_shape=jax.ShapeDtypeStruct((N, H_out, W_out, Cout), jnp.float32),
        scratch_shapes=[pltpu.VMEM((TH * W_out_p, Cout), jnp.float32)],
        compiler_params=pltpu.CompilerParams(
            dimension_semantics=("parallel", "parallel")),
    )(xd, w, b.reshape(1, Cout).astype(jnp.float32))


# ---------------------------------------------------------------------------
# ConvTranspose2d = zero-dilation + padding (glue) + stride-1 Pallas conv
# ---------------------------------------------------------------------------
def conv_transpose2d_nhwc(x, w_t, b, stride, padding, output_padding):
    """x: (N,H,W,Cin), w_t: (Cin,Cout,KH,KW) (PyTorch layout), b: (Cout,)."""
    sh, sw = stride
    ph, pw = padding
    oph, opw = output_padding
    N, H, W, Cin = x.shape
    _, Cout, KH, KW = w_t.shape
    assert KH - 1 - ph >= 0 and KW - 1 - pw >= 0, "padding > kernel-1 unsupported"
    x = x.astype(jnp.bfloat16)
    Hd, Wd = (H - 1) * sh + 1, (W - 1) * sw + 1
    xd = jnp.zeros((N, Hd, Wd, Cin), x.dtype).at[:, ::sh, ::sw, :].set(x)
    xd = jnp.pad(xd, ((0, 0),
                      (KH - 1 - ph, KH - 1 - ph + oph),
                      (KW - 1 - pw, KW - 1 - pw + opw),
                      (0, 0)))
    # equivalent forward-conv kernel: flip spatially, (Cin,Cout,KH,KW)->(KH,KW,Cin,Cout)
    w_conv = jnp.transpose(w_t[:, :, ::-1, ::-1], (2, 3, 0, 1))
    return conv2d_nhwc(xd, w_conv, b, stride=(1, 1), padding=(0, 0))


# ---------------------------------------------------------------------------
# BatchNorm2d (training-mode batch stats) + ReLU, fused Pallas kernel
# ---------------------------------------------------------------------------
def _bn_relu_kernel(y_ref, g_ref, bt_ref, o_ref):
    y = y_ref[...].astype(jnp.float32)              # (N, H, W, C)
    mean = jnp.mean(y, axis=(0, 1, 2), keepdims=True)
    var = jnp.mean(jnp.square(y - mean), axis=(0, 1, 2), keepdims=True)
    yn = (y - mean) * lax.rsqrt(var + _EPS)
    o_ref[...] = jnp.maximum(yn * g_ref[...] + bt_ref[...], 0.0).astype(o_ref.dtype)


def batchnorm_relu(y, gamma, beta):
    # TODO(synk): single-block global reduction; a tiled two-pass reduction
    #             would be required for activations exceeding one VMEM block.
    N, H, W, C = y.shape
    return pl.pallas_call(
        _bn_relu_kernel,
        grid=(1,),
        in_specs=[
            pl.BlockSpec((N, H, W, C), lambda i: (0, 0, 0, 0)),
            pl.BlockSpec((1, 1, 1, C), lambda i: (0, 0, 0, 0)),
            pl.BlockSpec((1, 1, 1, C), lambda i: (0, 0, 0, 0)),
        ],
        out_specs=pl.BlockSpec((N, H, W, C), lambda i: (0, 0, 0, 0)),
        out_shape=jax.ShapeDtypeStruct((N, H, W, C), jnp.bfloat16),
        compiler_params=pltpu.CompilerParams(
            dimension_semantics=("arbitrary",)),
    )(y, gamma.reshape(1, 1, 1, C), beta.reshape(1, 1, 1, C))


# ---------------------------------------------------------------------------
# Parameter init (deterministic, synthetic) and forward pass
# ---------------------------------------------------------------------------
_ENC_CFG = [  # (Cin, Cout, (KH,KW), stride, pad)
    (1, 32, (3, 7), (1, 2), (1, 3)),
    (32, 64, (3, 3), (1, 1), (1, 1)),
    (64, 128, (3, 3), (1, 2), (1, 1)),
    (128, 256, (3, 3), (1, 1), (1, 1)),
    (256, 512, (3, 3), (2, 2), (1, 1)),
    (512, 512, (3, 3), (1, 1), (1, 1)),
    (512, 512, (3, 3), (2, 2), (1, 1)),
]
_DEC_CFG = [  # (Cin, Cout, (KH,KW), stride, pad, out_pad, has_bn_relu)
    (512, 512, (3, 3), (1, 1), (1, 1), (0, 0), True),
    (512, 256, (3, 3), (1, 2), (1, 1), (0, 1), True),
    (256, 128, (3, 3), (1, 1), (1, 1), (0, 0), True),
    (128, 64, (3, 3), (1, 2), (1, 1), (0, 1), True),
    (64, 32, (3, 3), (1, 1), (1, 1), (0, 0), True),
    (32, 32, (3, 3), (1, 2), (1, 1), (0, 1), True),
    (32, 1, (3, 3), (1, 2), (1, 1), (0, 1), False),
]


def init_params(key):
    params = {"enc": [], "dec": []}
    for cin, cout, (kh, kw), s, p in _ENC_CFG:
        key, k1, k2, k3, k4 = jax.random.split(key, 5)
        fan_in = cin * kh * kw
        params["enc"].append(dict(
            w=jax.random.normal(k1, (kh, kw, cin, cout), jnp.float32) / jnp.sqrt(fan_in),
            b=0.1 * jax.random.normal(k2, (cout,), jnp.float32),
            gamma=1.0 + 0.1 * jax.random.normal(k3, (cout,), jnp.float32),
            beta=0.1 * jax.random.normal(k4, (cout,), jnp.float32),
            stride=s, pad=p))
    for cin, cout, (kh, kw), s, p, op, bn in _DEC_CFG:
        key, k1, k2, k3, k4 = jax.random.split(key, 5)
        fan_in = cin * kh * kw
        params["dec"].append(dict(
            w=jax.random.normal(k1, (cin, cout, kh, kw), jnp.float32) / jnp.sqrt(fan_in),
            b=0.1 * jax.random.normal(k2, (cout,), jnp.float32),
            gamma=1.0 + 0.1 * jax.random.normal(k3, (cout,), jnp.float32),
            beta=0.1 * jax.random.normal(k4, (cout,), jnp.float32),
            stride=s, pad=p, out_pad=op, bn=bn))
    return params


def audio_derivative_autoencoder(audio_nchw, params, derivative=True):
    """audio_nchw: (N, 1, H, W) float32  ->  (N, 1, H_out, W_out) float32."""
    n, c, h, w = audio_nchw.shape
    assert c == 1
    x_nhw = audio_nchw[:, 0, :, :]
    if derivative:
        x_nhw = derivative_pallas(x_nhw)              # diff along H (time), bf16
    else:
        x_nhw = x_nhw.astype(jnp.bfloat16)
    x = x_nhw[..., None]                              # NHWC, C=1
    for p in params["enc"]:
        x = conv2d_nhwc(x, p["w"], p["b"], p["stride"], p["pad"])       # f32
        x = batchnorm_relu(x, p["gamma"], p["beta"])                    # bf16
    for p in params["dec"]:
        x = conv_transpose2d_nhwc(x, p["w"], p["b"], p["stride"], p["pad"],
                                  p["out_pad"])                         # f32
        if p["bn"]:
            x = batchnorm_relu(x, p["gamma"], p["beta"])                # bf16
    return jnp.transpose(x, (0, 3, 1, 2)).astype(jnp.float32)           # NCHW


if __name__ == "__main__":
    key = jax.random.PRNGKey(0)
    kp, kx = jax.random.split(key)
    params = init_params(kp)
    # small but shape-consistent input: N=2, C=1, H=9 (time), W=32 (freq)
    audio = jax.random.normal(kx, (2, 1, 9, 32), jnp.float32)
    out = audio_derivative_autoencoder(audio, params, derivative=True)
    out = jax.block_until_ready(out)
    assert out.shape == (2, 1, 2, 32), out.shape
    assert bool(jnp.all(jnp.isfinite(out)))
    print("KERNEL_OK")
</pallas_src>

<mosaic_0001>
module attributes {stable_mosaic.version = 11 : i64} {
  func.func @_deriv_kernel(%arg0: i32, %arg1: memref<1x9x32xf32, #tpu.memory_space<vmem>>, %arg2: memref<1x8x32xbf16, #tpu.memory_space<vmem>>) attributes {dimension_semantics = [#tpu.dimension_semantics<parallel>], iteration_bounds = array<i64: 2>, scalar_prefetch = 0 : i64, scratch_operands = 0 : i64, tpu.core_type = #tpu.core_type<tc>, window_params = [{transform_indices = @transform_0, window_bounds = array<i64: 1, 9, 32>}, {transform_indices = @transform_1, window_bounds = array<i64: 1, 8, 32>}]} {
    %c0 = arith.constant 0 : index
    %c0_0 = arith.constant 0 : index
    %c0_1 = arith.constant 0 : index
    %0 = vector.load %arg1[%c0, %c0_0, %c0_1] : memref<1x9x32xf32, #tpu.memory_space<vmem>>, vector<1x9x32xf32>
    %1 = vector.shape_cast %0 : vector<1x9x32xf32> to vector<9x32xf32>
    %2 = vector.extract_strided_slice %1 {offsets = [1, 0], sizes = [8, 32], strides = [1, 1]} : vector<9x32xf32> to vector<8x32xf32>
    %3 = vector.extract_strided_slice %1 {offsets = [0, 0], sizes = [8, 32], strides = [1, 1]} : vector<9x32xf32> to vector<8x32xf32>
    %4 = arith.subf %2, %3 : vector<8x32xf32>
    %5 = arith.truncf %4 : vector<8x32xf32> to vector<8x32xbf16>
    %c0_2 = arith.constant 0 : index
    %c0_3 = arith.constant 0 : index
    %c0_4 = arith.constant 0 : index
    %6 = vector.load %arg2[%c0_2, %c0_3, %c0_4] : memref<1x8x32xbf16, #tpu.memory_space<vmem>>, vector<1x8x32xbf16>
    %7 = vector.shape_cast %6 : vector<1x8x32xbf16> to vector<8x32xbf16>
    %8 = vector.shape_cast %5 : vector<8x32xbf16> to vector<1x8x32xbf16>
    tpu.vector_store %arg2[%c0_2, %c0_3, %c0_4], %8 {strides = array<i32>} : memref<1x8x32xbf16, #tpu.memory_space<vmem>>, vector<1x8x32xbf16>,
    return
  }
  func.func @transform_0(%arg0: i32) -> (i32, i32, i32) {
    %c0_i32 = arith.constant 0 : i32
    %c0_i32_0 = arith.constant 0 : i32
    %c0_i32_1 = arith.constant 0 : i32
    return %arg0, %c0_i32, %c0_i32_0 : i32, i32, i32
  }
  func.func @transform_1(%arg0: i32) -> (i32, i32, i32) {
    %c0_i32 = arith.constant 0 : i32
    %c0_i32_0 = arith.constant 0 : i32
    %c0_i32_1 = arith.constant 0 : i32
    return %arg0, %c0_i32, %c0_i32_0 : i32, i32, i32
  }
}

</mosaic_0001>

<llo_original>
// kernel: tpu_custom_call.1
$region0: #{tpu_custom_call.1}
  #allocation0 [shape = 'u32[]', space=smem, size = 0x4, offset = 0x4, fixed_abs, tag = 'smem constant byte address 0x4 - core index']
  #allocation1 [shape = 'u32[72,128]{1,0:T(1,128)}', space=vmem, size = 0x9000, scoped, tag = 'internal scratch']
  %s0 = inlined_call_operand.vmem [shape: f32[2,9,32], index: 0, kind: input, shape index: {}]
  %s1 = inlined_call_operand.hbm [shape: bf16[2,8,32], index: 1, kind: output, shape index: {}]
  %s2 = sld [smem:[#allocation0]]
  $region37: #{tpu_custom_call.1} parent=0
    _
  %s4 = ssub.s32 1, %s2
  %s5 = scalar_select 0, %s4, %s2
  $region1: #{tpu_custom_call.1} parent=0
    #allocation2 [shape = 'u8[4096]{0}', space=vmem, size = 0x1000, scoped, tag = 'output window, operand 0']
    #allocation3 [shape = 's32[2]{0}', space=sflag, size = 0x8, scoped, tag = 'scoped memory for tpu_custom_call.1']
    %6 = vsyncpa [#allocation3], 0
    %s7 = scalar_lea.sflag [#allocation3], 1
    %8 = vsyncpa %s7, 0
    loop: start=0, step=1, limit=4
    $region2: #{tpu_custom_call.1} parent=1 // loop_pre_header
      _
    $region3: #{tpu_custom_call.1} parent=1 // loop_header
      %s10 = sphi 0, %s14
      %p11 = scmp.ge.s32.totalorder %s10, 4
      %s20 = sphi 0, %s22
      %s23 = sphi 0, %s20
      %s24 = sphi 0, %s23
      %s40 = sphi 0, %s24
      %s46 = sphi 0, %s48
      %s49 = sphi 0, %s46
      %s50 = sphi 0, %s49
      %s66 = sphi 0, %s50
    $region4: #{tpu_custom_call.1} parent=1 // loop_header_branch
      %13 = sbr.rel (%p11) target = $region8
    $region5: #{tpu_custom_call.1} parent=1 // loop_body
      %s15 = ssub.s32 %s10, 1
      %s16 = ssub.s32 %s10, 2
      %s17 = sadd.s32 %s10, 1
      %s18 = ssub.s32 %s10, %s17
      %p19 = scmp.eq.s32.totalorder %s18, 0
      %s21 = sadd.s32 %s20, 1
      %s22 = scalar_select %p19, %s20, %s21
      %p25 = pneg %p19
      %p26 = scmp.eq.s32.totalorder %s10, 1
      %p27 = por %p25, %p26
      %p28 = scmp.ne.s32.totalorder %s20, %s23
      %p29 = scmp.eq.s32.totalorder %s10, 0
      %p30 = por %p28, %p29
      %p31 = scmp.ne.s32.totalorder %s20, %s23
      %p32 = scmp.eq.s32.totalorder %s15, 1
      %p33 = por %p31, %p32
      %p34 = scmp.ne.s32.totalorder %s23, %s24
      %p35 = scmp.eq.s32.totalorder %s15, 0
      %p36 = por %p34, %p35
      %p37 = scmp.ne.s32.totalorder %s23, %s24
      %p38 = scmp.eq.s32.totalorder %s16, 1
      %p39 = por %p37, %p38
      %p41 = scmp.ne.s32.totalorder %s24, %s40
      %p42 = scmp.eq.s32.totalorder %s16, 0
      %p43 = por %p41, %p42
      %s44 = ssub.s32 %s10, %s17
      %p45 = scmp.eq.s32.totalorder %s44, 0
      %s47 = sadd.s32 %s46, 1
      %s48 = scalar_select %p45, %s46, %s47
      %p51 = pneg %p45
      %p52 = scmp.eq.s32.totalorder %s10, 1
      %p53 = por %p51, %p52
      %p54 = scmp.ne.s32.totalorder %s46, %s49
      %p55 = scmp.eq.s32.totalorder %s10, 0
      %p56 = por %p54, %p55
      %p57 = scmp.ne.s32.totalorder %s46, %s49
      %p58 = scmp.eq.s32.totalorder %s15, 1
      %p59 = por %p57, %p58
      %p60 = scmp.ne.s32.totalorder %s49, %s50
      %p61 = scmp.eq.s32.totalorder %s15, 0
      %p62 = por %p60, %p61
      %p63 = scmp.ne.s32.totalorder %s49, %s50
      %p64 = scmp.eq.s32.totalorder %s16, 1
      %p65 = por %p63, %p64
      %p67 = scmp.ne.s32.totalorder %s50, %s66
      %p68 = scmp.eq.s32.totalorder %s16, 0
      %p69 = por %p67, %p68
      %p70 = scmp.le.s32.totalorder 1, %s10
      %p71 = scmp.lt.s32.totalorder %s10, 3
      %p72 = pnand %p70, %p71
      %p73 = pneg %p72
      // Predicated region
      $region9: #{tpu_custom_call.1} parent=5 // pred_check
        _
      $region10: #{tpu_custom_call.1} parent=5 // pred_check_branch
        %75 = sbr.rel (%p72) target = $region12
      $region11: #{tpu_custom_call.1} parent=5 // pred_region
        %s76 = ssub.s32 %s10, 1
      $region12: #{tpu_custom_call.1} parent=5 // pred_fallthru
        _
      %p77 = scmp.lt.s32.totalorder %s10, 2
      // Predicated region
      $region13: #{tpu_custom_call.1} parent=5 // pred_check
        %p78 = pneg %p77
      $region14: #{tpu_custom_call.1} parent=5 // pred_check_branch
        %80 = sbr.rel (%p78) target = $region16
      $region15: #{tpu_custom_call.1} parent=5 // pred_region
        // Predicated region
        $region17: #{tpu_custom_call.1} parent=15 // pred_check
          %p81 = pneg %p30
        $region18: #{tpu_custom_call.1} parent=15 // pred_check_branch
          %83 = sbr.rel (%p81) target = $region20
        $region19: #{tpu_custom_call.1} parent=15 // pred_region
          %p84 = scmp.lt.s32.totalorder %s10, 1
          %s85 = scalar_select %p84, %s10, 1
          %s86 = smul.addr %s85, 2
          %s87 = smul.addr %s86, 8
          %s88 = scalar_lea.vmem %s0, %s87
        $region20: #{tpu_custom_call.1} parent=15 // pred_fallthru
          _
      $region16: #{tpu_custom_call.1} parent=5 // pred_fallthru
        _
      %p89 = scmp.le.s32.totalorder 1, %s10
      %p90 = scmp.lt.s32.totalorder %s10, 3
      %p91 = pnand %p89, %p90
      %p92 = pneg %p91
      // Predicated region
      $region21: #{tpu_custom_call.1} parent=5 // pred_check
        _
      $region22: #{tpu_custom_call.1} parent=5 // pred_check_branch
        %94 = sbr.rel (%p91) target = $region24
      $region23: #{tpu_custom_call.1} parent=5 // pred_region
        %s95 = ssub.s32 %s10, 1
        %p96 = scmp.lt.s32.totalorder %s15, 1
        %s97 = scalar_select %p96, %s15, 1
        %s98 = smul.addr %s97, 2
        %s99 = smul.addr %s98, 8
        %s100 = scalar_lea.vmem %s0, %s99
        %p101 = pneg %p36
        %p102 = pneg %p33
        %p103 = pneg %p62
        %p104 = pneg %p59
        %s105 = sand.u32 %s49, 1
        %s106 = scalar_lea.sflag [#allocation3], %s105
        %s107 = sand.u32 %s49, 1
        %s108 = smul.addr %s107, 4
        %s109 = scalar_lea.vmem [#allocation2], %s108
        %p110 = scmp.lt.s32.totalorder %s15, 1
        %s111 = scalar_select %p110, %s15, 1
        %s112 = smul.addr %s111, 2
        %s113 = smul.addr %s112, 8
        %s114 = scalar_lea.vmem %s0, %s113
        %v115 = vld [vmem:[%s114] sm:$0xff]
        %v116 = vld [vmem:[%s114 + $0x8] sm:$0x1]
        %v118 = vrot.slane %v115, 7
        %v120 = vsub.f32 %v115, %v118
        %v121 = vsub.f32 %v116, %v118
        %v122 = vpack.c.bf16 %v120, %v120
        %v123 = vpack.c.bf16 %v121, %v121
        %vm124 = vsmask.f32 3328
        %vm125 = vsmask.f32 7440
        %vm126 = vmor %vm124, %vm125
        %v128 = vshrl.u32 %v122, 16
        %v130 = vrot.slane %v128, 4
        %v131 = vshll.u32 %v122, 16
        %v133 = vrot.slane %v131, 5
        %v134 = vor.u32 %v130, %v133
        %v135 = vrot.slane %v134, 4
        %v137 = vshll.u32 %v123, 16
        %v139 = vrot.slane %v137, 5
        %v140 = vsel %vm126, %v135, %v139
        %vm142 = vcmask 257024
        %143 = vst.msk [vmem:[%s109] sm:$0xf] %vm142, %v140
        %s144 = sand.u32 %s49, 1
        %s145 = scalar_lea.sflag [#allocation3], %s144
        %s146 = sand.u32 %s49, 1
        %s147 = smul.addr %s146, 4
        %s148 = scalar_lea.vmem [#allocation2], %s147
        // Predicated region
        $region25: #{tpu_custom_call.1} parent=23 // pred_check
          %p149 = pneg %p59
        $region26: #{tpu_custom_call.1} parent=23 // pred_check_branch
          %151 = sbr.rel (%p149) target = $region28
        $region27: #{tpu_custom_call.1} parent=23 // pred_region
          %153 = vsyncadd %s145, 0
          %s154 = smul.addr %s15, 4
          %s155 = scalar_lea.hbm %s1, %s154
          %s157 = sshll.u32 %s148, 4
          %s158 = int_to_ptr.vmem [resolvable:$true] %s157
          %s159 = sshll.u32 %s155, 4
          %s160 = int_to_ptr.hbm [resolvable:$true] %s159
          %162 = dma.vmem_to_hbm [thread:$0]  %s158, 64, %s160, %s145
        $region28: #{tpu_custom_call.1} parent=23 // pred_fallthru
          _
      $region24: #{tpu_custom_call.1} parent=5 // pred_fallthru
        _
      %p163 = scmp.le.s32.totalorder 2, %s10
      // Predicated region
      $region29: #{tpu_custom_call.1} parent=5 // pred_check
        %p164 = pneg %p163
      $region30: #{tpu_custom_call.1} parent=5 // pred_check_branch
        %166 = sbr.rel (%p164) target = $region32
      $region31: #{tpu_custom_call.1} parent=5 // pred_region
        %s167 = ssub.s32 %s10, 2
        // Predicated region
        $region33: #{tpu_custom_call.1} parent=31 // pred_check
          %p168 = pneg %p65
        $region34: #{tpu_custom_call.1} parent=31 // pred_check_branch
          %170 = sbr.rel (%p168) target = $region36
        $region35: #{tpu_custom_call.1} parent=31 // pred_region
          %s171 = sand.u32 %s50, 1
          %s172 = scalar_lea.sflag [#allocation3], %s171
          %s173 = sand.u32 %s50, 1
          %s174 = smul.addr %s173, 4
          %s175 = scalar_lea.vmem [#allocation2], %s174
          %177 = dma.done %s172, 64
        $region36: #{tpu_custom_call.1} parent=31 // pred_fallthru
          _
      $region32: #{tpu_custom_call.1} parent=5 // pred_fallthru
        _
    $region6: #{tpu_custom_call.1} parent=1 // loop_footer
      %s14 = sadd.s32 1, %s10
    $region7: #{tpu_custom_call.1} parent=1 // loop_footer_branch
      %9 = sbr.rel target = $region3
    $region8: #{tpu_custom_call.1} parent=1 // loop_exit
      _
    %178 = vsyncpa [#allocation3], 1
    %s179 = scalar_lea.sflag [#allocation3], 1
    %180 = vsyncpa %s179, 1

</llo_original>
